<compile_context>
chip_gen: v5e
topology: v5e:2x2
jax: 0.10.0
libtpu: 0.0.40
codegen_flags: <defaults>
</compile_context>

<pallas_src>
import math
import functools

import jax
import jax.numpy as jnp
from jax.experimental import pallas as pl
from jax.experimental.pallas import tpu as pltpu


def make_pe_table(d_model: int, max_len: int = 5000) -> jnp.ndarray:
    """Sin/cos positional-encoding buffer, identical to the PyTorch __init__."""
    pos = jnp.arange(max_len, dtype=jnp.float32)[:, None]               # (L, 1)
    div = jnp.exp(
        jnp.arange(0, d_model, 2, dtype=jnp.float32)
        * (-math.log(10000.0) / d_model)
    )                                                                    # (D/2,)
    ang = pos * div                                                      # (L, D/2)
    pe = jnp.zeros((max_len, d_model), dtype=jnp.float32)
    pe = pe.at[:, 0::2].set(jnp.sin(ang))
    pe = pe.at[:, 1::2].set(jnp.cos(ang))
    return pe                                                            # (L, D)


# ----------------------------- kernels --------------------------------------


def _pe_add_kernel(x_ref, pe_ref, o_ref):
    # x_ref: (ts, B, D)   pe_ref: (ts, 1, D)   o_ref: (ts, B, D)
    y = x_ref[...].astype(jnp.float32) + pe_ref[...]      # sublane broadcast
    o_ref[...] = y.astype(o_ref.dtype)


def _pe_add_dropout_kernel(x_ref, pe_ref, u_ref, o_ref, *, p: float):
    # Inverted dropout: keep with prob (1-p), scale kept values by 1/(1-p).
    y = x_ref[...].astype(jnp.float32) + pe_ref[...]
    keep = u_ref[...] >= jnp.float32(p)                    # P(keep) = 1 - p
    scale = 1.0 / (1.0 - p)
    o_ref[...] = jnp.where(keep, y * scale, 0.0).astype(o_ref.dtype)


# ----------------------------- wrapper ---------------------------------------


def positional_encoding(
    x: jnp.ndarray,            # (S, B, D)
    pe_table: jnp.ndarray,     # (max_len, D) float32
    *,
    p: float = 0.1,
    training: bool = False,
    rng_key: jax.Array | None = None,
    tile_seq: int | None = None,
    target_block_bytes: int = 4 << 20,   # ~4 MiB per streamed block
) -> jnp.ndarray:
    assert 0.0 <= p < 1.0, "dropout p must be in [0, 1)"
    S, B, D = x.shape
    pe = pe_table[:S].reshape(S, 1, D).astype(jnp.float32)   # glue: slice buffer

    itemsize = jnp.dtype(x.dtype).itemsize
    # Pick a sequence tile so each (ts, B, D) block is ~target_block_bytes.
    # (Pallas double-buffers x, out, pe and -- in training -- the mask, so the
    # real VMEM footprint is ~2x the sum of the block sizes.)
    if tile_seq is None:
        ts = max(1, int(target_block_bytes) // max(1, B * D * itemsize))
    else:
        ts = int(tile_seq)
    ts = max(1, min(ts, S))
    grid = (pl.cdiv(S, ts),)

    use_dropout = training and p > 0.0

    # Estimated double-buffered VMEM footprint; request matching scoped VMEM
    # (kept <= 48 MiB so it is valid on v7x's 64 MiB physical VMEM).
    xo_block = ts * B * D * itemsize
    pe_block = ts * D * 4
    mask_block = ts * B * D * 4 if use_dropout else 0
    est_vmem = 2 * (2 * xo_block + pe_block + mask_block)
    vmem_limit = int(min(48 << 20, max(32 << 20, int(1.5 * est_vmem))))

    compiler_params = pltpu.CompilerParams(
        dimension_semantics=("parallel",),       # seq tiles are independent
        vmem_limit_bytes=vmem_limit,
    )

    # NOTE: last two block dims equal the full array dims (B, D), satisfying
    # the (8,128) rule for any B/D.  For peak store bandwidth, callers should
    # use D a multiple of 128 and B a multiple of 8 (lane/sublane dense).
    x_spec = pl.BlockSpec((ts, B, D), lambda i: (i, 0, 0))
    pe_spec = pl.BlockSpec((ts, 1, D), lambda i: (i, 0, 0))
    out_spec = pl.BlockSpec((ts, B, D), lambda i: (i, 0, 0))
    out_shape = jax.ShapeDtypeStruct((S, B, D), x.dtype)

    if use_dropout:
        if rng_key is None:
            rng_key = jax.random.PRNGKey(0)
        u = jax.random.uniform(rng_key, (S, B, D), dtype=jnp.float32)
        kernel = functools.partial(_pe_add_dropout_kernel, p=float(p))
        return pl.pallas_call(
            kernel,
            out_shape=out_shape,
            grid=grid,
            in_specs=[x_spec, pe_spec,
                      pl.BlockSpec((ts, B, D), lambda i: (i, 0, 0))],
            out_specs=out_spec,
            input_output_aliases={0: 0},         # write result in place of x
            compiler_params=compiler_params,
        )(x, pe, u)

    return pl.pallas_call(
        _pe_add_kernel,
        out_shape=out_shape,
        grid=grid,
        in_specs=[x_spec, pe_spec],
        out_specs=out_spec,
        input_output_aliases={0: 0},             # write result in place of x
        compiler_params=compiler_params,
    )(x, pe)


# ------------------------------- smoke test ----------------------------------

if __name__ == "__main__":
    d_model = 32
    seq_len = 8
    batch = 2
    p = 0.1

    key = jax.random.PRNGKey(0)
    x = jax.random.normal(key, (seq_len, batch, d_model), dtype=jnp.float32)

    pe_table = make_pe_table(d_model, max_len=5000)
    ref = x + pe_table[:seq_len][:, None, :]

    # Eval mode (dropout is identity) -- must match the reference exactly.
    out_eval = positional_encoding(x, pe_table, p=p, training=False)
    out_eval = jax.block_until_ready(out_eval)
    assert out_eval.shape == (seq_len, batch, d_model)
    assert jnp.allclose(out_eval, ref, atol=1e-6, rtol=1e-6), "eval-mode mismatch"

    # Training mode (inverted dropout with a wrapper-generated mask).
    out_train = positional_encoding(
        x, pe_table, p=p, training=True, rng_key=jax.random.PRNGKey(1234)
    )
    out_train = jax.block_until_ready(out_train)
    assert out_train.shape == (seq_len, batch, d_model)
    scaled = ref / (1.0 - p)
    ok = jnp.logical_or(
        jnp.isclose(out_train, 0.0, atol=1e-6),
        jnp.isclose(out_train, scaled, atol=1e-5, rtol=1e-5),
    )
    assert bool(jnp.all(ok)), "train-mode dropout mismatch"

    print("KERNEL_OK")
</pallas_src>

<mosaic_0001>
module attributes {stable_mosaic.version = 11 : i64} {
  func.func @_pe_add_kernel(%arg0: i32, %arg1: memref<8x2x32xf32, #tpu.memory_space<vmem>>, %arg2: memref<8x1x32xf32, #tpu.memory_space<vmem>>, %arg3: memref<8x2x32xf32, #tpu.memory_space<vmem>>) attributes {dimension_semantics = [#tpu.dimension_semantics<parallel>], iteration_bounds = array<i64: 1>, scalar_prefetch = 0 : i64, scratch_operands = 0 : i64, tpu.core_type = #tpu.core_type<tc>, window_params = [{transform_indices = @transform_0, window_bounds = array<i64: 8, 2, 32>}, {transform_indices = @transform_1, window_bounds = array<i64: 8, 1, 32>}, {transform_indices = @transform_2, window_bounds = array<i64: 8, 2, 32>}]} {
    %c0 = arith.constant 0 : index
    %c0_0 = arith.constant 0 : index
    %c0_1 = arith.constant 0 : index
    %0 = vector.load %arg1[%c0, %c0_0, %c0_1] : memref<8x2x32xf32, #tpu.memory_space<vmem>>, vector<8x2x32xf32>
    %c0_2 = arith.constant 0 : index
    %c0_3 = arith.constant 0 : index
    %c0_4 = arith.constant 0 : index
    %1 = vector.load %arg2[%c0_2, %c0_3, %c0_4] : memref<8x1x32xf32, #tpu.memory_space<vmem>>, vector<8x1x32xf32>
    %2 = vector.broadcast %1 : vector<8x1x32xf32> to vector<8x2x32xf32>
    %3 = arith.addf %0, %2 : vector<8x2x32xf32>
    %c0_5 = arith.constant 0 : index
    %c0_6 = arith.constant 0 : index
    %c0_7 = arith.constant 0 : index
    %4 = vector.load %arg3[%c0_5, %c0_6, %c0_7] : memref<8x2x32xf32, #tpu.memory_space<vmem>>, vector<8x2x32xf32>
    tpu.vector_store %arg3[%c0_5, %c0_6, %c0_7], %3 {strides = array<i32>} : memref<8x2x32xf32, #tpu.memory_space<vmem>>, vector<8x2x32xf32>,
    return
  }
  func.func @transform_0(%arg0: i32) -> (i32, i32, i32) {
    %c0_i32 = arith.constant 0 : i32
    %c0_i32_0 = arith.constant 0 : i32
    %c0_i32_1 = arith.constant 0 : i32
    return %arg0, %c0_i32, %c0_i32_0 : i32, i32, i32
  }
  func.func @transform_1(%arg0: i32) -> (i32, i32, i32) {
    %c0_i32 = arith.constant 0 : i32
    %c0_i32_0 = arith.constant 0 : i32
    %c0_i32_1 = arith.constant 0 : i32
    return %arg0, %c0_i32, %c0_i32_0 : i32, i32, i32
  }
  func.func @transform_2(%arg0: i32) -> (i32, i32, i32) {
    %c0_i32 = arith.constant 0 : i32
    %c0_i32_0 = arith.constant 0 : i32
    %c0_i32_1 = arith.constant 0 : i32
    return %arg0, %c0_i32, %c0_i32_0 : i32, i32, i32
  }
}

</mosaic_0001>

<llo_original>
// kernel: tpu_custom_call.1
$region0: #{tpu_custom_call.1}
  #allocation0 [shape = 'u32[]', space=smem, size = 0x4, offset = 0x4, fixed_abs, tag = 'smem constant byte address 0x4 - core index']
  #allocation1 [shape = 'u32[72,128]{1,0:T(1,128)}', space=vmem, size = 0x9000, scoped, tag = 'internal scratch']
  %s0 = inlined_call_operand.hbm [shape: f32[8,2,32], index: 0, kind: input, shape index: {}, may-alias: {0,2}]
  %s1 = inlined_call_operand.vmem [shape: f32[8,1,32], index: 1, kind: input, shape index: {}]
  %s2 = inlined_call_operand.hbm [shape: f32[8,2,32], index: 2, kind: output, shape index: {}, may-alias: {0,2}]
  %s3 = sld [smem:[#allocation0]]
  $region22: #{tpu_custom_call.1} parent=0
    _
  %s5 = ssub.s32 1, %s3
  %s6 = scalar_select 0, %s5, %s3
  $region1: #{tpu_custom_call.1} parent=0
    #allocation2 [shape = 'u8[8192]{0}', space=vmem, size = 0x2000, scoped, tag = 'input window, operand 0, single buffered']
    #allocation3 [shape = 's32[1]{0}', space=sflag, size = 0x4, scoped, tag = 'scoped memory for tpu_custom_call.1']
    #allocation4 [shape = 's32[1]{0}', space=sflag, size = 0x4, scoped, tag = 'scoped memory for tpu_custom_call.1']
    #allocation5 [shape = 'u8[8192]{0}', space=vmem, size = 0x2000, scoped, tag = 'output window, operand 0, single buffered']
    %7 = vsyncpa [#allocation3], 0
    %8 = vsyncpa [#allocation4], 0
    // Predicated region
    $region2: #{tpu_custom_call.1} parent=1 // pred_check
      _
    $region3: #{tpu_custom_call.1} parent=1 // pred_check_branch
      %10 = sbr.rel (0) target = $region5
    $region4: #{tpu_custom_call.1} parent=1 // pred_region
      %12 = vsyncadd [#allocation3], 0
      %s13 = sshll.u32 %s0, 4
      %s14 = int_to_ptr.hbm [resolvable:$true] %s13
      %s15 = sshll.u32 [#allocation2], 4
      %s16 = int_to_ptr.vmem [resolvable:$true] %s15
      %21 = dma.hbm_to_vmem [thread:$0]  %s14, 256, %s16, [#allocation3], 32, 32, 2
    $region5: #{tpu_custom_call.1} parent=1 // pred_fallthru
      _
    // Predicated region
    $region6: #{tpu_custom_call.1} parent=1 // pred_check
      _
    $region7: #{tpu_custom_call.1} parent=1 // pred_check_branch
      %23 = sbr.rel (0) target = $region9
    $region8: #{tpu_custom_call.1} parent=1 // pred_region
      _
    $region9: #{tpu_custom_call.1} parent=1 // pred_fallthru
      _
    // Predicated region
    $region10: #{tpu_custom_call.1} parent=1 // pred_check
      _
    $region11: #{tpu_custom_call.1} parent=1 // pred_check_branch
      %25 = sbr.rel (0) target = $region13
    $region12: #{tpu_custom_call.1} parent=1 // pred_region
      %27 = dma.done [#allocation3], 256
    $region13: #{tpu_custom_call.1} parent=1 // pred_fallthru
      _
    %v28 = vld [vmem:[#allocation2] sm:$0x3]
    %v29 = vld [vmem:[#allocation2 + $0x2] sm:$0x3]
    %v30 = vld [vmem:[#allocation2 + $0x4] sm:$0x3]
    %v31 = vld [vmem:[#allocation2 + $0x6] sm:$0x3]
    %v32 = vld [vmem:[#allocation2 + $0x8] sm:$0x3]
    %v33 = vld [vmem:[#allocation2 + $0xa] sm:$0x3]
    %v34 = vld [vmem:[#allocation2 + $0xc] sm:$0x3]
    %v35 = vld [vmem:[#allocation2 + $0xe] sm:$0x3]
    %v36 = vld [vmem:[%s1] sm:$0x1]
    %v37 = vld [vmem:[%s1 + $0x1] sm:$0x1]
    %v38 = vld [vmem:[%s1 + $0x2] sm:$0x1]
    %v39 = vld [vmem:[%s1 + $0x3] sm:$0x1]
    %v40 = vld [vmem:[%s1 + $0x4] sm:$0x1]
    %v41 = vld [vmem:[%s1 + $0x5] sm:$0x1]
    %v42 = vld [vmem:[%s1 + $0x6] sm:$0x1]
    %v43 = vld [vmem:[%s1 + $0x7] sm:$0x1]
    %v52 = vperm.slane %v36, 0
    %v53 = vperm.slane %v37, 0
    %v54 = vperm.slane %v38, 0
    %v55 = vperm.slane %v39, 0
    %v56 = vperm.slane %v40, 0
    %v57 = vperm.slane %v41, 0
    %v58 = vperm.slane %v42, 0
    %v59 = vperm.slane %v43, 0
    %v68 = vadd.f32 %v28, %v52
    %v69 = vadd.f32 %v29, %v53
    %v70 = vadd.f32 %v30, %v54
    %v71 = vadd.f32 %v31, %v55
    %v72 = vadd.f32 %v32, %v56
    %v73 = vadd.f32 %v33, %v57
    %v74 = vadd.f32 %v34, %v58
    %v75 = vadd.f32 %v35, %v59
    %vm76 = vcmask 254976
    %77 = vst.msk [vmem:[#allocation5] sm:$0x3] %vm76, %v68
    %78 = vst.msk [vmem:[#allocation5 + $0x2] sm:$0x3] %vm76, %v69
    %79 = vst.msk [vmem:[#allocation5 + $0x4] sm:$0x3] %vm76, %v70
    %80 = vst.msk [vmem:[#allocation5 + $0x6] sm:$0x3] %vm76, %v71
    %81 = vst.msk [vmem:[#allocation5 + $0x8] sm:$0x3] %vm76, %v72
    %82 = vst.msk [vmem:[#allocation5 + $0xa] sm:$0x3] %vm76, %v73
    %83 = vst.msk [vmem:[#allocation5 + $0xc] sm:$0x3] %vm76, %v74
    %84 = vst.msk [vmem:[#allocation5 + $0xe] sm:$0x3] %vm76, %v75
    // Predicated region
    $region14: #{tpu_custom_call.1} parent=1 // pred_check
      _
    $region15: #{tpu_custom_call.1} parent=1 // pred_check_branch
      %86 = sbr.rel (0) target = $region17
    $region16: #{tpu_custom_call.1} parent=1 // pred_region
      %88 = vsyncadd [#allocation4], 0
      %s89 = sshll.u32 [#allocation5], 4
      %s90 = int_to_ptr.vmem [resolvable:$true] %s89
      %s91 = sshll.u32 %s2, 4
      %s92 = int_to_ptr.hbm [resolvable:$true] %s91
      %97 = dma.vmem_to_hbm [thread:$0]  %s90, 256, %s92, [#allocation4], 32, 32, 2
    $region17: #{tpu_custom_call.1} parent=1 // pred_fallthru
      _
    // Predicated region
    $region18: #{tpu_custom_call.1} parent=1 // pred_check
      _
    $region19: #{tpu_custom_call.1} parent=1 // pred_check_branch
      %99 = sbr.rel (0) target = $region21
    $region20: #{tpu_custom_call.1} parent=1 // pred_region
      %101 = dma.done [#allocation4], 256
    $region21: #{tpu_custom_call.1} parent=1 // pred_fallthru
      _
    %102 = vsyncpa [#allocation3], 1
    %103 = vsyncpa [#allocation4], 1

</llo_original>
